<compile_context>
chip_gen: v6e
topology: v6e:2x2x1
jax: 0.10.0
libtpu: 0.0.40
codegen_flags: <defaults>
</compile_context>

<pallas_src>
from typing import NamedTuple

import jax
import jax.numpy as jnp
from jax.experimental import pallas as pl
from jax.experimental.pallas import tpu as pltpu


def _round_up(n: int, m: int) -> int:
    return (n + m - 1) // m * m


def _ceil_div(a: int, b: int) -> int:
    return (a + b - 1) // b


def _pick_batch_tile(B: int, batch_tile: int) -> int:
    """Batch tile: multiple of 8 (sublane rule), never padded past B by more than
    one tile, and capped so the grid has >= 2 steps whenever B allows it."""
    tb = max(8, _round_up(min(batch_tile, B), 8))
    if B > 8:
        tb = min(tb, max(8, _round_up(_ceil_div(B, 2), 8)))
    return tb


# --------------------------------------------------------------------------
# One-time parameter preparation (hoisted out of the per-call path).
# --------------------------------------------------------------------------
class PreparedParams(NamedTuple):
    w1: jax.Array   # [D_in, H_p]            hidden-layer weights (param_dtype)
    b1: jax.Array   # [1,    H_p]            hidden-layer bias (f32)
    wh: jax.Array   # [H_p,  2*D_out_p]      fused heads: [w_mu | w_log_sigma]
    bh: jax.Array   # [1,    2*D_out_p]      fused head biases (f32)
    d_out: int      # un-padded output width


def prepare_params(params, *, param_dtype=jnp.float32) -> PreparedParams:
    """Pad to lane-dense widths, fuse the two heads, and cast the matmul weights.

    Call once and reuse: this is the only place weights are read/rewritten.
    param_dtype=jnp.bfloat16 halves the weights' HBM + VMEM footprint and runs
    at full MXU rate on every generation (all elementwise math stays f32);
    expect ~bf16-level error on mu/log_sigma in that case.
    """
    D_in, H = params["w1"].shape
    D_out = params["w_mu"].shape[1]
    H_p = _round_up(H, 128)
    D_out_p = _round_up(D_out, 128)

    def pad2(a, r, c):
        a = a.reshape((-1, a.shape[-1])) if a.ndim == 2 else a.reshape((1, -1))
        return jnp.pad(a, ((0, r - a.shape[0]), (0, c - a.shape[1])))

    w1 = pad2(params["w1"], D_in, H_p).astype(param_dtype)
    b1 = pad2(params["b1"], 1, H_p).astype(jnp.float32)
    # Fuse the two heads: a single [H_p, 2*D_out_p] weight / [1, 2*D_out_p] bias.
    # Each head is padded to a multiple of 128 so the in-kernel mu / log_sigma
    # slices start on lane-aligned offsets (0 and D_out_p).
    wh = jnp.concatenate([pad2(params["w_mu"], H_p, D_out_p),
                          pad2(params["w_ls"], H_p, D_out_p)], axis=1).astype(param_dtype)
    bh = jnp.concatenate([pad2(params["b_mu"], 1, D_out_p),
                          pad2(params["b_ls"], 1, D_out_p)], axis=1).astype(jnp.float32)
    return PreparedParams(w1, b1, wh, bh, D_out)


# --------------------------------------------------------------------------
# Kernels
# --------------------------------------------------------------------------
def _model_heads(x_ref, w1_ref, b1_ref, wh_ref, bh_ref, d_out):
    """model(input) -> (mu, log_sigma) for one batch tile. f32 accumulation."""
    xv = x_ref[...].astype(w1_ref.dtype)                      # MXU input dtype
    h = jnp.dot(xv, w1_ref[...], preferred_element_type=jnp.float32)
    h = jnp.maximum(h + b1_ref[...], 0.0)                     # bias + ReLU (VPU, f32)
    y = jnp.dot(h.astype(wh_ref.dtype), wh_ref[...],
                preferred_element_type=jnp.float32) + bh_ref[...]
    d_out_p = wh_ref.shape[-1] // 2                           # lane-aligned split point
    mu = y[:, :d_out]
    log_sigma = y[:, d_out_p:d_out_p + d_out]
    return mu, log_sigma


def _sampler_kernel(x_ref, w1_ref, b1_ref, wh_ref, bh_ref, eps_ref, out_ref):
    """pyro.sample(name, Normal(mu, exp(log_sigma))) with caller-supplied eps."""
    mu, log_sigma = _model_heads(x_ref, w1_ref, b1_ref, wh_ref, bh_ref,
                                 out_ref.shape[-1])
    # exp() runs on the EUP slot (hidden under MXU/store work); fuse on the VPU.
    out_ref[...] = (mu + jnp.exp(log_sigma) * eps_ref[...]).astype(out_ref.dtype)


def _sampler_kernel_rng(seed_ref, x_ref, w1_ref, b1_ref, wh_ref, bh_ref, out_ref):
    """Same, but eps is drawn in-kernel (no [B, D_out] HBM read for the noise)."""
    # Distinct stream per batch tile; independent across "parallel" cores.
    pltpu.prng_seed(seed_ref[0] + pl.program_id(0))
    mu, log_sigma = _model_heads(x_ref, w1_ref, b1_ref, wh_ref, bh_ref,
                                 out_ref.shape[-1])
    eps = pltpu.stateful_normal(out_ref.shape, jnp.float32)
    out_ref[...] = (mu + jnp.exp(log_sigma) * eps).astype(out_ref.dtype)


# --------------------------------------------------------------------------
# Wrapper
# --------------------------------------------------------------------------
def _cost_and_vmem(B, D_in, TB, prepared, x_itemsize, out_itemsize, with_eps):
    H_p = prepared.w1.shape[1]
    two_dp = prepared.wh.shape[1]
    D_out = prepared.d_out
    p_item = jnp.dtype(prepared.w1.dtype).itemsize
    weight_bytes = ((prepared.w1.size + prepared.wh.size) * p_item
                    + (prepared.b1.size + prepared.bh.size) * 4)
    eps_tile = TB * D_out * 4 if with_eps else 0
    tile_bytes = TB * D_in * x_itemsize + TB * D_out * out_itemsize + eps_tile
    tmp_bytes = TB * (H_p + two_dp) * 4                       # h and y temporaries (f32)

    flops = 2 * B * (D_in * H_p + H_p * two_dp)
    bytes_accessed = int(weight_bytes + B * D_in * x_itemsize
                         + B * D_out * out_itemsize
                         + (B * D_out * 4 if with_eps else 0))
    cost = pl.CostEstimate(flops=flops, transcendentals=B * D_out,
                           bytes_accessed=bytes_accessed)

    # TODO(synk): resident weights are budgeted at 2 buffers (default pipelining);
    # single-buffering them (pl.Buffered(1)) would halve that share but is left
    # at the default for portability across jax versions.
    vmem_needed = 2 * weight_bytes + 2 * tile_bytes + tmp_bytes
    vmem_limit = int(min(max(int(vmem_needed * 1.25) + (2 << 20), 32 << 20), 100 << 20))
    return cost, vmem_limit


def model_based_sampler(x, prepared: PreparedParams, eps=None, *, rng_seed=None,
                        batch_tile=512, out_dtype=jnp.float32):
    """Pallas-backed ModelBasedSampler.forward.

    x:        [B, D_in] activations (f32 or bf16).
    prepared: output of prepare_params() (built once, reused across calls).
    eps:      [B, D_out] standard-normal noise (matches the reference RNG), or
              None with rng_seed set to draw the noise in-kernel instead
              (saves the whole eps HBM read; different RNG stream).
    """
    B, D_in = x.shape
    D_out = prepared.d_out
    if D_in != prepared.w1.shape[0]:
        raise ValueError("x feature dim does not match prepared params")

    TB = _pick_batch_tile(B, batch_tile)
    grid = (pl.cdiv(B, TB),)                                   # boundary tile is masked

    cost, vmem_limit = _cost_and_vmem(
        B, D_in, TB, prepared, jnp.dtype(x.dtype).itemsize,
        jnp.dtype(out_dtype).itemsize, with_eps=eps is not None)
    cp = pltpu.CompilerParams(dimension_semantics=("parallel",),  # both TCs on v7x
                              vmem_limit_bytes=vmem_limit)
    out_shape = jax.ShapeDtypeStruct((B, D_out), out_dtype)

    if eps is not None:
        return pl.pallas_call(
            _sampler_kernel,
            out_shape=out_shape,
            grid=grid,
            in_specs=[
                pl.BlockSpec((TB, D_in), lambda i: (i, 0)),        # x   (pipelined)
                pl.BlockSpec(prepared.w1.shape, lambda i: (0, 0)),  # w1  (resident)
                pl.BlockSpec(prepared.b1.shape, lambda i: (0, 0)),  # b1  (resident)
                pl.BlockSpec(prepared.wh.shape, lambda i: (0, 0)),  # fused head weights
                pl.BlockSpec(prepared.bh.shape, lambda i: (0, 0)),  # fused head biases
                pl.BlockSpec((TB, D_out), lambda i: (i, 0)),        # eps (pipelined)
            ],
            out_specs=pl.BlockSpec((TB, D_out), lambda i: (i, 0)),
            compiler_params=cp,
            cost_estimate=cost,
        )(x, prepared.w1, prepared.b1, prepared.wh, prepared.bh, eps)

    if rng_seed is None:
        raise ValueError("provide either eps or rng_seed")
    seed = jnp.asarray(rng_seed, dtype=jnp.int32).reshape((1,))
    grid_spec = pltpu.PrefetchScalarGridSpec(
        num_scalar_prefetch=1,
        grid=grid,
        in_specs=[
            pl.BlockSpec((TB, D_in), lambda i, s: (i, 0)),
            pl.BlockSpec(prepared.w1.shape, lambda i, s: (0, 0)),
            pl.BlockSpec(prepared.b1.shape, lambda i, s: (0, 0)),
            pl.BlockSpec(prepared.wh.shape, lambda i, s: (0, 0)),
            pl.BlockSpec(prepared.bh.shape, lambda i, s: (0, 0)),
        ],
        out_specs=pl.BlockSpec((TB, D_out), lambda i, s: (i, 0)),
    )
    return pl.pallas_call(
        _sampler_kernel_rng,
        out_shape=out_shape,
        grid_spec=grid_spec,
        compiler_params=cp,
        cost_estimate=cost,
    )(seed, x, prepared.w1, prepared.b1, prepared.wh, prepared.bh)


def _reference(x, params, eps):
    h = jnp.maximum(x @ params["w1"] + params["b1"], 0.0)
    mu = h @ params["w_mu"] + params["b_mu"]
    log_sigma = h @ params["w_ls"] + params["b_ls"]
    return mu + jnp.exp(log_sigma) * eps


if __name__ == "__main__":
    B, D_in, H, D_out = 8, 32, 64, 32

    key = jax.random.PRNGKey(0)
    (k_x, k_w1, k_b1, k_wmu, k_bmu, k_wls, k_bls, k_eps,
     k_x2, k_eps2) = jax.random.split(key, 10)

    x = jax.random.normal(k_x, (B, D_in), dtype=jnp.float32)
    params = {
        "w1":   jax.random.normal(k_w1, (D_in, H), dtype=jnp.float32) * 0.1,
        "b1":   jax.random.normal(k_b1, (1, H), dtype=jnp.float32) * 0.01,
        "w_mu": jax.random.normal(k_wmu, (H, D_out), dtype=jnp.float32) * 0.1,
        "b_mu": jax.random.normal(k_bmu, (1, D_out), dtype=jnp.float32) * 0.01,
        "w_ls": jax.random.normal(k_wls, (H, D_out), dtype=jnp.float32) * 0.1,
        "b_ls": jax.random.normal(k_bls, (1, D_out), dtype=jnp.float32) * 0.01,
    }
    # Stochastic draw for pyro.sample (reparameterization trick), deterministic here.
    eps = jax.random.normal(k_eps, (B, D_out), dtype=jnp.float32)

    # One-time parameter prep (hoisted out of the per-call path).
    prepared = prepare_params(params)

    # 1) Single-tile batch.
    out = jax.block_until_ready(model_based_sampler(x, prepared, eps))
    ref = _reference(x, params, eps)
    assert out.shape == (B, D_out)
    assert jnp.allclose(out, ref, atol=1e-5, rtol=1e-5)

    # 2) Multi-step batch grid (exercises the pipelined / multi-core path),
    #    reusing the same prepared params.
    B2 = 24
    x2 = jax.random.normal(k_x2, (B2, D_in), dtype=jnp.float32)
    eps2 = jax.random.normal(k_eps2, (B2, D_out), dtype=jnp.float32)
    out2 = jax.block_until_ready(model_based_sampler(x2, prepared, eps2, batch_tile=8))
    ref2 = _reference(x2, params, eps2)
    assert out2.shape == (B2, D_out)
    assert jnp.allclose(out2, ref2, atol=1e-5, rtol=1e-5)

    # TODO(synk): pyro.sample's trace / name-registration side effects have no
    # Pallas equivalent; only the reparameterized sampling math is implemented.
    # The in-kernel-noise path (rng_seed=...) uses a different RNG stream than
    # the reference, so it is not numerically checked here.
    print("KERNEL_OK")
</pallas_src>

<mosaic_0001>
module attributes {stable_mosaic.version = 11 : i64} {
  func.func @_sampler_kernel(%arg0: i32, %arg1: memref<8x32xf32, #tpu.memory_space<vmem>>, %arg2: memref<32x128xf32, #tpu.memory_space<vmem>>, %arg3: memref<1x128xf32, #tpu.memory_space<vmem>>, %arg4: memref<128x256xf32, #tpu.memory_space<vmem>>, %arg5: memref<1x256xf32, #tpu.memory_space<vmem>>, %arg6: memref<8x32xf32, #tpu.memory_space<vmem>>, %arg7: memref<8x32xf32, #tpu.memory_space<vmem>>) attributes {dimension_semantics = [#tpu.dimension_semantics<parallel>], iteration_bounds = array<i64: 1>, scalar_prefetch = 0 : i64, scratch_operands = 0 : i64, tpu.core_type = #tpu.core_type<tc>, window_params = [{transform_indices = @transform_0, window_bounds = array<i64: 8, 32>}, {pipeline_mode = #tpu.pipeline_mode<synchronous>, transform_indices = @transform_1, window_bounds = array<i64: 32, 128>}, {pipeline_mode = #tpu.pipeline_mode<synchronous>, transform_indices = @transform_2, window_bounds = array<i64: 1, 128>}, {pipeline_mode = #tpu.pipeline_mode<synchronous>, transform_indices = @transform_3, window_bounds = array<i64: 128, 256>}, {pipeline_mode = #tpu.pipeline_mode<synchronous>, transform_indices = @transform_4, window_bounds = array<i64: 1, 256>}, {transform_indices = @transform_5, window_bounds = array<i64: 8, 32>}, {transform_indices = @transform_6, window_bounds = array<i64: 8, 32>}]} {
    %c0 = arith.constant 0 : index
    %c0_0 = arith.constant 0 : index
    %0 = vector.load %arg1[%c0, %c0_0] : memref<8x32xf32, #tpu.memory_space<vmem>>, vector<8x32xf32>
    %c0_1 = arith.constant 0 : index
    %c0_2 = arith.constant 0 : index
    %1 = vector.load %arg2[%c0_1, %c0_2] : memref<32x128xf32, #tpu.memory_space<vmem>>, vector<32x128xf32>
    %cst = arith.constant dense<0.000000e+00> : vector<8x128xf32>
    %2 = tpu.matmul %0, %1, %cst {dimension_numbers = #tpu.dot_dimension_numbers<[1], [0], [0], [1], [0, 0, 1, 1], [], []>} : vector<8x32xf32>, vector<32x128xf32>, vector<8x128xf32> -> vector<8x128xf32>
    %c0_3 = arith.constant 0 : index
    %c0_4 = arith.constant 0 : index
    %3 = vector.load %arg3[%c0_3, %c0_4] : memref<1x128xf32, #tpu.memory_space<vmem>>, vector<1x128xf32>
    %4 = vector.broadcast %3 : vector<1x128xf32> to vector<8x128xf32>
    %5 = arith.addf %2, %4 : vector<8x128xf32>
    %cst_5 = arith.constant 0.000000e+00 : f32
    %6 = vector.broadcast %cst_5 : f32 to vector<8x128xf32>
    %7 = arith.maximumf %5, %6 : vector<8x128xf32>
    %c0_6 = arith.constant 0 : index
    %c0_7 = arith.constant 0 : index
    %8 = vector.load %arg4[%c0_6, %c0_7] : memref<128x256xf32, #tpu.memory_space<vmem>>, vector<128x256xf32>
    %cst_8 = arith.constant dense<0.000000e+00> : vector<8x256xf32>
    %9 = tpu.matmul %7, %8, %cst_8 {dimension_numbers = #tpu.dot_dimension_numbers<[1], [0], [0], [1], [0, 0, 1, 1], [], []>} : vector<8x128xf32>, vector<128x256xf32>, vector<8x256xf32> -> vector<8x256xf32>
    %c0_9 = arith.constant 0 : index
    %c0_10 = arith.constant 0 : index
    %10 = vector.load %arg5[%c0_9, %c0_10] : memref<1x256xf32, #tpu.memory_space<vmem>>, vector<1x256xf32>
    %11 = vector.broadcast %10 : vector<1x256xf32> to vector<8x256xf32>
    %12 = arith.addf %9, %11 : vector<8x256xf32>
    %13 = vector.extract_strided_slice %12 {offsets = [0, 0], sizes = [8, 32], strides = [1, 1]} : vector<8x256xf32> to vector<8x32xf32>
    %14 = vector.extract_strided_slice %12 {offsets = [0, 128], sizes = [8, 32], strides = [1, 1]} : vector<8x256xf32> to vector<8x32xf32>
    %15 = math.exp %14 : vector<8x32xf32>
    %c0_11 = arith.constant 0 : index
    %c0_12 = arith.constant 0 : index
    %16 = vector.load %arg6[%c0_11, %c0_12] : memref<8x32xf32, #tpu.memory_space<vmem>>, vector<8x32xf32>
    %17 = arith.mulf %15, %16 : vector<8x32xf32>
    %18 = arith.addf %13, %17 : vector<8x32xf32>
    %c0_13 = arith.constant 0 : index
    %c0_14 = arith.constant 0 : index
    %19 = vector.load %arg7[%c0_13, %c0_14] : memref<8x32xf32, #tpu.memory_space<vmem>>, vector<8x32xf32>
    tpu.vector_store %arg7[%c0_13, %c0_14], %18 {strides = array<i32>} : memref<8x32xf32, #tpu.memory_space<vmem>>, vector<8x32xf32>,
    return
  }
  func.func @transform_0(%arg0: i32) -> (i32, i32) {
    %c0_i32 = arith.constant 0 : i32
    %c0_i32_0 = arith.constant 0 : i32
    return %arg0, %c0_i32 : i32, i32
  }
  func.func @transform_1(%arg0: i32) -> (i32, i32) {
    %c0_i32 = arith.constant 0 : i32
    %c0_i32_0 = arith.constant 0 : i32
    %c0_i32_1 = arith.constant 0 : i32
    return %c0_i32, %c0_i32_0 : i32, i32
  }
  func.func @transform_2(%arg0: i32) -> (i32, i32) {
    %c0_i32 = arith.constant 0 : i32
    %c0_i32_0 = arith.constant 0 : i32
    %c0_i32_1 = arith.constant 0 : i32
    return %c0_i32, %c0_i32_0 : i32, i32
  }
  func.func @transform_3(%arg0: i32) -> (i32, i32) {
    %c0_i32 = arith.constant 0 : i32
    %c0_i32_0 = arith.constant 0 : i32
    %c0_i32_1 = arith.constant 0 : i32
    return %c0_i32, %c0_i32_0 : i32, i32
  }
  func.func @transform_4(%arg0: i32) -> (i32, i32) {
    %c0_i32 = arith.constant 0 : i32
    %c0_i32_0 = arith.constant 0 : i32
    %c0_i32_1 = arith.constant 0 : i32
    return %c0_i32, %c0_i32_0 : i32, i32
  }
  func.func @transform_5(%arg0: i32) -> (i32, i32) {
    %c0_i32 = arith.constant 0 : i32
    %c0_i32_0 = arith.constant 0 : i32
    return %arg0, %c0_i32 : i32, i32
  }
  func.func @transform_6(%arg0: i32) -> (i32, i32) {
    %c0_i32 = arith.constant 0 : i32
    %c0_i32_0 = arith.constant 0 : i32
    return %arg0, %c0_i32 : i32, i32
  }
}

</mosaic_0001>

<llo_original>
// kernel: tpu_custom_call.1
$region0: #{tpu_custom_call.1}
  #allocation0 [shape = 'u32[]', space=smem, size = 0x4, offset = 0x4, fixed_abs, tag = 'smem constant byte address 0x4 - core index']
  #allocation1 [shape = 'u32[144,128]{1,0:T(1,128)}', space=vmem, size = 0x12000, scoped, tag = 'internal scratch']
  %s0 = inlined_call_operand.hbm [shape: f32[8,32], index: 0, kind: input, shape index: {}]
  %s1 = inlined_call_operand.hbm [shape: f32[32,128], index: 1, kind: input, shape index: {}]
  %s2 = inlined_call_operand.vmem [shape: f32[1,128], index: 2, kind: input, shape index: {}]
  %s3 = inlined_call_operand.hbm [shape: f32[128,256], index: 3, kind: input, shape index: {}]
  %s4 = inlined_call_operand.hbm [shape: f32[1,256], index: 4, kind: input, shape index: {}]
  %s5 = inlined_call_operand.vmem [shape: f32[8,32], index: 5, kind: input, shape index: {}]
  %s6 = inlined_call_operand.hbm [shape: f32[8,32], index: 6, kind: output, shape index: {}]
  %s7 = sld [smem:[#allocation0]]
  $region50: #{tpu_custom_call.1} parent=0
    _
  %s9 = ssub.s32 1, %s7
  %s10 = scalar_select 0, %s9, %s7
  $region1: #{tpu_custom_call.1} parent=0
    #allocation2 [shape = 'u8[4096]{0}', space=vmem, size = 0x1000, scoped, tag = 'input window, operand 0, single buffered']
    #allocation3 [shape = 's32[1]{0}', space=sflag, size = 0x4, scoped, tag = 'scoped memory for tpu_custom_call.1']
    #allocation4 [shape = 's32[1]{0}', space=sflag, size = 0x4, scoped, tag = 'scoped memory for tpu_custom_call.1']
    #allocation5 [shape = 'u8[16384]{0}', space=vmem, size = 0x4000, scoped, tag = 'input window, operand 1, single buffered']
    #allocation6 [shape = 's32[1]{0}', space=sflag, size = 0x4, scoped, tag = 'scoped memory for tpu_custom_call.1']
    #allocation7 [shape = 'u8[131072]{0}', space=vmem, size = 0x20000, scoped, tag = 'input window, operand 3, single buffered']
    #allocation8 [shape = 'u8[1024]{0}', space=vmem, size = 0x400, scoped, tag = 'input window, operand 4, single buffered']
    #allocation9 [shape = 's32[1]{0}', space=sflag, size = 0x4, scoped, tag = 'scoped memory for tpu_custom_call.1']
    #allocation10 [shape = 'u8[4096]{0}', space=vmem, size = 0x1000, scoped, tag = 'output window, operand 0, single buffered']
    %11 = vsyncpa [#allocation3], 0
    %12 = vsyncpa [#allocation6], 0
    %13 = vsyncpa [#allocation9], 0
    %14 = vsyncpa [#allocation4], 0
    // Predicated region
    $region2: #{tpu_custom_call.1} parent=1 // pred_check
      _
    $region3: #{tpu_custom_call.1} parent=1 // pred_check_branch
      %16 = sbr.rel (0) target = $region5
    $region4: #{tpu_custom_call.1} parent=1 // pred_region
      %s18 = ssub.s32 128, 128
      %19 = vsyncadd [#allocation3], %s18
      %s21 = sshll.u32 [#allocation2], 4
      %s22 = int_to_ptr.vmem [resolvable:$true] %s21
      %24 = dma.hbm_to_vmem [thread:$0]  %s0, 128, %s22, [#allocation3]
    $region5: #{tpu_custom_call.1} parent=1 // pred_fallthru
      _
    // Predicated region
    $region6: #{tpu_custom_call.1} parent=1 // pred_check
      _
    $region7: #{tpu_custom_call.1} parent=1 // pred_check_branch
      %26 = sbr.rel (0) target = $region9
    $region8: #{tpu_custom_call.1} parent=1 // pred_region
      %s28 = ssub.s32 512, 512
      %29 = vsyncadd [#allocation6], %s28
      %s30 = sshll.u32 [#allocation5], 4
      %s31 = int_to_ptr.vmem [resolvable:$true] %s30
      %36 = dma.hbm_to_vmem [thread:$0]  %s1, 512, %s31, [#allocation6], 128, 128, 8
    $region9: #{tpu_custom_call.1} parent=1 // pred_fallthru
      _
    // Predicated region
    $region10: #{tpu_custom_call.1} parent=1 // pred_check
      _
    $region11: #{tpu_custom_call.1} parent=1 // pred_check_branch
      %38 = sbr.rel (0) target = $region13
    $region12: #{tpu_custom_call.1} parent=1 // pred_region
      _
    $region13: #{tpu_custom_call.1} parent=1 // pred_fallthru
      _
    // Predicated region
    $region14: #{tpu_custom_call.1} parent=1 // pred_check
      _
    $region15: #{tpu_custom_call.1} parent=1 // pred_check_branch
      %40 = sbr.rel (0) target = $region17
    $region16: #{tpu_custom_call.1} parent=1 // pred_region
      %s42 = ssub.s32 4096, 4096
      %43 = vsyncadd [#allocation6], %s42
      %s44 = sshll.u32 [#allocation7], 4
      %s45 = int_to_ptr.vmem [resolvable:$true] %s44
      %50 = dma.hbm_to_vmem [thread:$0]  %s3, 4096, %s45, [#allocation6], 256, 256, 16
    $region17: #{tpu_custom_call.1} parent=1 // pred_fallthru
      _
    // Predicated region
    $region18: #{tpu_custom_call.1} parent=1 // pred_check
      _
    $region19: #{tpu_custom_call.1} parent=1 // pred_check_branch
      %52 = sbr.rel (0) target = $region21
    $region20: #{tpu_custom_call.1} parent=1 // pred_region
      %s54 = ssub.s32 32, 32
      %55 = vsyncadd [#allocation9], %s54
      %s57 = sshll.u32 [#allocation8], 4
      %s58 = int_to_ptr.vmem [resolvable:$true] %s57
      %60 = dma.hbm_to_vmem [thread:$0]  %s4, 32, %s58, [#allocation9]
    $region21: #{tpu_custom_call.1} parent=1 // pred_fallthru
      _
    // Predicated region
    $region22: #{tpu_custom_call.1} parent=1 // pred_check
      _
    $region23: #{tpu_custom_call.1} parent=1 // pred_check_branch
      %62 = sbr.rel (0) target = $region25
    $region24: #{tpu_custom_call.1} parent=1 // pred_region
      _
    $region25: #{tpu_custom_call.1} parent=1 // pred_fallthru
      _
    // Predicated region
    $region26: #{tpu_custom_call.1} parent=1 // pred_check
      _
    $region27: #{tpu_custom_call.1} parent=1 // pred_check_branch
      %64 = sbr.rel (0) target = $region29
    $region28: #{tpu_custom_call.1} parent=1 // pred_region
      %65 = dma.done [#allocation3], 128
    $region29: #{tpu_custom_call.1} parent=1 // pred_fallthru
      _
    // Predicated region
    $region30: #{tpu_custom_call.1} parent=1 // pred_check
      _
    $region31: #{tpu_custom_call.1} parent=1 // pred_check_branch
      %67 = sbr.rel (0) target = $region33
    $region32: #{tpu_custom_call.1} parent=1 // pred_region
      %68 = dma.done [#allocation6], 512
    $region33: #{tpu_custom_call.1} parent=1 // pred_fallthru
      _
    // Predicated region
    $region34: #{tpu_custom_call.1} parent=1 // pred_check
      _
    $region35: #{tpu_custom_call.1} parent=1 // pred_check_branch
      %70 = sbr.rel (0) target = $region37
    $region36: #{tpu_custom_call.1} parent=1 // pred_region
      %71 = dma.done [#allocation6], 4096
    $region37: #{tpu_custom_call.1} parent=1 // pred_fallthru
      _
    // Predicated region
    $region38: #{tpu_custom_call.1} parent=1 // pred_check
      _
    $region39: #{tpu_custom_call.1} parent=1 // pred_check_branch
      %73 = sbr.rel (0) target = $region41
    $region40: #{tpu_custom_call.1} parent=1 // pred_region
      %74 = dma.done [#allocation9], 32
    $region41: #{tpu_custom_call.1} parent=1 // pred_fallthru
      _
    %v75 = vld [vmem:[#allocation2] sm:$0xff]
    %v76 = vld [vmem:[#allocation5] sm:$0xff]
    %v77 = vld [vmem:[#allocation5 + $0x8] sm:$0xff]
    %v78 = vld [vmem:[#allocation5 + $0x10] sm:$0xff]
    %v79 = vld [vmem:[#allocation5 + $0x18] sm:$0xff]
    %v80 = vld [vmem:[%s2] sm:$0x1]
    %v82 = vlaneseq
    %v83 = vshrl.u32 %v82, 7
    %v84 = vsub.s32 0, %v83
    %v85 = vrot.slane %v80, %v84
    %vm87 = vcmask 261120
    %v89 = vsel %vm87, %v75, 0
    %91 = vmatprep.subr.mxu0 0.0
    %92 = vmatpush1.msra.mxu0 0.0
    %93 = vmatprep.subr.mxu0 0.0
    %94 = vmatpush1.msra.mxu0 0.0
    %95 = vmatprep.subr.mxu0 0.0
    %96 = vmatpush1.msra.mxu0 0.0
    %97 = vmatprep.subr.mxu0 0.0
    %98 = vmatpush1.msra.mxu0 0.0
    %99 = vmatprep.subr.mxu0 0.0
    %100 = vmatpush1.msra.mxu0 0.0
    %101 = vmatprep.subr.mxu0 0.0
    %102 = vmatpush1.msra.mxu0 0.0
    %103 = vmatprep.subr.mxu0 0.0
    %104 = vmatpush1.msra.mxu0 0.0
    %105 = vmatprep.subr.mxu0 0.0
    %106 = vmatpush1.msra.mxu0 0.0
    %107 = vmatprep.subr.mxu0 0.0
    %108 = vmatpush1.msra.mxu0 0.0
    %109 = vmatprep.subr.mxu0 0.0
    %110 = vmatpush1.msra.mxu0 0.0
    %111 = vmatprep.subr.mxu0 0.0
    %112 = vmatpush1.msra.mxu0 0.0
    %113 = vmatprep.subr.mxu0 0.0
    %114 = vmatpush1.msra.mxu0 0.0
    %115 = vmatprep.subr.mxu0 0.0
    %116 = vmatpush1.msra.mxu0 %v79
    %117 = vmatprep.subr.mxu0 0.0
    %118 = vmatpush1.msra.mxu0 %v78
    %119 = vmatprep.subr.mxu0 0.0
    %120 = vmatpush1.msra.mxu0 %v77
    %121 = vmatprep.subr.mxu0 0.0
    %122 = vmatpush1.msra.mxu0 %v76
    %123 = vmatprep.subr.mxu0 0.0
    %124 = vmatpush2.msra.mxu0 0.0
    %125 = vmatprep.subr.mxu0 0.0
    %126 = vmatpush2.msra.mxu0 0.0
    %127 = vmatprep.subr.mxu0 0.0
    %128 = vmatpush2.msra.mxu0 0.0
    %129 = vmatprep.subr.mxu0 0.0
    %130 = vmatpush2.msra.mxu0 0.0
    %131 = vmatprep.subr.mxu0 0.0
    %132 = vmatpush2.msra.mxu0 0.0
    %133 = vmatprep.subr.mxu0 0.0
    %134 = vmatpush2.msra.mxu0 0.0
    %135 = vmatprep.subr.mxu0 0.0
    %136 = vmatpush2.msra.mxu0 0.0
    %137 = vmatprep.subr.mxu0 0.0
    %138 = vmatpush2.msra.mxu0 0.0
    %139 = vmatprep.subr.mxu0 0.0
    %140 = vmatpush2.msra.mxu0 0.0
    %141 = vmatprep.subr.mxu0 0.0
    %142 = vmatpush2.msra.mxu0 0.0
    %143 = vmatprep.subr.mxu0 0.0
    %144 = vmatpush2.msra.mxu0 0.0
    %145 = vmatprep.subr.mxu0 0.0
    %146 = vmatpush2.msra.mxu0 0.0
    %147 = vmatprep.subr.mxu0 0.0
    %148 = vmatpush2.msra.mxu0 0.0
    %149 = vmatprep.subr.mxu0 0.0
    %150 = vmatpush2.msra.mxu0 0.0
    %151 = vmatprep.subr.mxu0 0.0
    %152 = vmatpush2.msra.mxu0 0.0
    %153 = vmatprep.subr.mxu0 0.0
    %154 = vmatpush2.msra.mxu0 0.0
    %155 = vmatprep.mubr.f32.mxu0 0.0
    %156 = vmatmul.mubr.f32.gmra.mxu0 %v89
    %v157 = vpop.f32.mrf.mxu0
    %v158 = vadd.f32 %v85, %v157
    %v159 = vpop.f32.mrf.mxu0
    %160 = vdwg.mxu0
    %v161 = vmax.f32 %v158, 0.0
    %v162 = vld [vmem:[#allocation7] sm:$0xff]
    %v163 = vld [vmem:[#allocation7 + $0x8] sm:$0xff]
    %v164 = vld [vmem:[#allocation7 + $0x10] sm:$0xff]
    %v165 = vld [vmem:[#allocation7 + $0x18] sm:$0xff]
    %v166 = vld [vmem:[#allocation7 + $0x20] sm:$0xff]
    %v167 = vld [vmem:[#allocation7 + $0x28] sm:$0xff]
    %v168 = vld [vmem:[#allocation7 + $0x30] sm:$0xff]
    %v169 = vld [vmem:[#allocation7 + $0x38] sm:$0xff]
    %v170 = vld [vmem:[#allocation7 + $0x40] sm:$0xff]
    %v171 = vld [vmem:[#allocation7 + $0x48] sm:$0xff]
    %v172 = vld [vmem:[#allocation7 + $0x50] sm:$0xff]
    %v173 = vld [vmem:[#allocation7 + $0x58] sm:$0xff]
    %v174 = vld [vmem:[#allocation7 + $0x60] sm:$0xff]
    %v175 = vld [vmem:[#allocation7 + $0x68] sm:$0xff]
    %v176 = vld [vmem:[#allocation7 + $0x70] sm:$0xff]
    %v177 = vld [vmem:[#allocation7 + $0x78] sm:$0xff]
    %v178 = vld [vmem:[#allocation7 + $0x80] sm:$0xff]
    %v179 = vld [vmem:[#allocation7 + $0x88] sm:$0xff]
    %v180 = vld [vmem:[#allocation7 + $0x90] sm:$0xff]
    %v181 = vld [vmem:[#allocation7 + $0x98] sm:$0xff]
    %v182 = vld [vmem:[#allocation7 + $0xa0] sm:$0xff]
    %v183 = vld [vmem:[#allocation7 + $0xa8] sm:$0xff]
    %v184 = vld [vmem:[#allocation7 + $0xb0] sm:$0xff]
    %v185 = vld [vmem:[#allocation7 + $0xb8] sm:$0xff]
    %v186 = vld [vmem:[#allocation7 + $0xc0] sm:$0xff]
    %v187 = vld [vmem:[#allocation7 + $0xc8] sm:$0xff]
    %v188 = vld [vmem:[#allocation7 + $0xd0] sm:$0xff]
    %v189 = vld [vmem:[#allocation7 + $0xd8] sm:$0xff]
    %v190 = vld [vmem:[#allocation7 + $0xe0] sm:$0xff]
    %v191 = vld [vmem:[#allocation7 + $0xe8] sm:$0xff]
    %v192 = vld [vmem:[#allocation7 + $0xf0] sm:$0xff]
    %v193 = vld [vmem:[#allocation7 + $0xf8] sm:$0xff]
    %v194 = vld [vmem:[#allocation8] sm:$0x3]
    %v196 = vlaneseq
    %v197 = vshrl.u32 %v196, 7
    %v198 = vsub.s32 0, %v197
    %v199 = vrot.slane %v194, %v198
    %v200 = vlaneseq
    %v201 = vshrl.u32 %v200, 7
    %v202 = vsub.s32 1, %v201
    %v203 = vrot.slane %v194, %v202
    %206 = vmatprep.subr.mxu0 %v193
    %207 = vmatpush1.msra.mxu0 %v192
    %208 = vmatprep.subr.mxu0 %v191
    %209 = vmatpush1.msra.mxu0 %v190
    %210 = vmatprep.subr.mxu0 %v189
    %211 = vmatpush1.msra.mxu0 %v188
    %212 = vmatprep.subr.mxu0 %v187
    %213 = vmatpush1.msra.mxu0 %v186
    %214 = vmatprep.subr.mxu0 %v185
    %215 = vmatpush1.msra.mxu0 %v184
    %216 = vmatprep.subr.mxu0 %v183
    %217 = vmatpush1.msra.mxu0 %v182
    %218 = vmatprep.subr.mxu0 %v181
    %219 = vmatpush1.msra.mxu0 %v180
    %220 = vmatprep.subr.mxu0 %v179
    %221 = vmatpush1.msra.mxu0 %v178
    %222 = vmatprep.subr.mxu0 %v177
    %223 = vmatpush1.msra.mxu0 %v176
    %224 = vmatprep.subr.mxu0 %v175
    %225 = vmatpush1.msra.mxu0 %v174
    %226 = vmatprep.subr.mxu0 %v173
    %227 = vmatpush1.msra.mxu0 %v172
    %228 = vmatprep.subr.mxu0 %v171
    %229 = vmatpush1.msra.mxu0 %v170
    %230 = vmatprep.subr.mxu0 %v169
    %231 = vmatpush1.msra.mxu0 %v168
    %232 = vmatprep.subr.mxu0 %v167
    %233 = vmatpush1.msra.mxu0 %v166
    %234 = vmatprep.subr.mxu0 %v165
    %235 = vmatpush1.msra.mxu0 %v164
    %236 = vmatprep.subr.mxu0 %v163
    %237 = vmatpush1.msra.mxu0 %v162
    %238 = vmatprep.subr.mxu0 0.0
    %239 = vmatpush2.msra.mxu0 0.0
    %240 = vmatprep.subr.mxu0 0.0
    %241 = vmatpush2.msra.mxu0 0.0
    %242 = vmatprep.subr.mxu0 0.0
    %243 = vmatpush2.msra.mxu0 0.0
    %244 = vmatprep.subr.mxu0 0.0
    %245 = vmatpush2.msra.mxu0 0.0
    %246 = vmatprep.subr.mxu0 0.0
    %247 = vmatpush2.msra.mxu0 0.0
    %248 = vmatprep.subr.mxu0 0.0
    %249 = vmatpush2.msra.mxu0 0.0
    %250 = vmatprep.subr.mxu0 0.0
    %251 = vmatpush2.msra.mxu0 0.0
    %252 = vmatprep.subr.mxu0 0.0
    %253 = vmatpush2.msra.mxu0 0.0
    %254 = vmatprep.subr.mxu0 0.0
    %255 = vmatpush2.msra.mxu0 0.0
    %256 = vmatprep.subr.mxu0 0.0
    %257 = vmatpush2.msra.mxu0 0.0
    %258 = vmatprep.subr.mxu0 0.0
    %259 = vmatpush2.msra.mxu0 0.0
    %260 = vmatprep.subr.mxu0 0.0
    %261 = vmatpush2.msra.mxu0 0.0
    %262 = vmatprep.subr.mxu0 0.0
    %263 = vmatpush2.msra.mxu0 0.0
    %264 = vmatprep.subr.mxu0 0.0
    %265 = vmatpush2.msra.mxu0 0.0
    %266 = vmatprep.subr.mxu0 0.0
    %267 = vmatpush2.msra.mxu0 0.0
    %268 = vmatprep.subr.mxu0 0.0
    %269 = vmatpush2.msra.mxu0 0.0
    %270 = vmatprep.mubr.f32.mxu0 0.0
    %271 = vmatmul.mubr.f32.gmra.mxu0 %v161
    %v272 = vpop.f32.mrf.mxu0
    %v273 = vadd.f32 %v199, %v272
    %v274 = vpop.f32.mrf.mxu0
    %v275 = vadd.f32 %v203, %v274
    %276 = vdwg.mxu0
    %v277 = vmul.f32 %v275, 1.442695
    %v278 = vpow.pop %v277
    %v279 = vld [vmem:[%s5] sm:$0xff]
    %v280 = vmul.f32 %v278, %v279
    %v281 = vadd.f32 %v273, %v280
    %282 = vst.msk [vmem:[#allocation10] sm:$0xff] %vm87, %v281
    // Predicated region
    $region42: #{tpu_custom_call.1} parent=1 // pred_check
      _
    $region43: #{tpu_custom_call.1} parent=1 // pred_check_branch
      %284 = sbr.rel (0) target = $region45
    $region44: #{tpu_custom_call.1} parent=1 // pred_region
      %s286 = ssub.s32 128, 128
      %287 = vsyncadd [#allocation4], %s286
      %s289 = sshll.u32 [#allocation10], 4
      %s290 = int_to_ptr.vmem [resolvable:$true] %s289
      %292 = dma.vmem_to_hbm [thread:$0]  %s290, 128, %s6, [#allocation4]
    $region45: #{tpu_custom_call.1} parent=1 // pred_fallthru
      _
    // Predicated region
    $region46: #{tpu_custom_call.1} parent=1 // pred_check
      _
    $region47: #{tpu_custom_call.1} parent=1 // pred_check_branch
      %294 = sbr.rel (0) target = $region49
    $region48: #{tpu_custom_call.1} parent=1 // pred_region
      %295 = dma.done [#allocation4], 128
    $region49: #{tpu_custom_call.1} parent=1 // pred_fallthru
      _
    %296 = vsyncpa [#allocation3], 1
    %297 = vsyncpa [#allocation6], 1
    %298 = vsyncpa [#allocation9], 1
    %299 = vsyncpa [#allocation4], 1

</llo_original>
